<compile_context>
chip_gen: v6e
topology: v6e:2x2x1
jax: 0.10.0
libtpu: 0.0.40
codegen_flags: <defaults>
</compile_context>

<pallas_src>
import functools
import math

import jax
import jax.numpy as jnp
from jax.experimental import pallas as pl
from jax.experimental.pallas import tpu as pltpu

_SQRT_2_OVER_PI = math.sqrt(2.0 / math.pi)
_INV_SQRT2 = 1.0 / math.sqrt(2.0)
# NOTE: intentional deviation from the reference when |x@w_sig+b_sig| > 20:
# sigma saturates at e^+-20 to avoid inf*0 -> NaN when sigma under/overflows.
_LOG_SIGMA_CLAMP = 20.0


def _round_up(a: int, m: int) -> int:
    return ((a + m - 1) // m) * m


def _tpu_defaults():
    """Per-generation VMEM budget / tile defaults (conservative if unknown)."""
    kind = ""
    try:
        kind = jax.devices()[0].device_kind.lower()
    except Exception:
        pass
    if ("v5" in kind) or ("v6" in kind):
        # 128 MiB VMEM, single TensorCore: big tiles, big budget, explicit limit
        # (v5e's default scoped VMEM is only 16 MiB).
        return {"tm": 512, "vmem_budget": 96 << 20, "vmem_limit": 100 << 20,
                "two_tc": False}
    # v7x (64 MiB / TC, 2 TCs) or unknown: conservative budget, keep >=2 blocks.
    return {"tm": 256, "vmem_budget": 40 << 20, "vmem_limit": 48 << 20,
            "two_tc": True}


def _folded_normal_mean(mu, log_sigma):
    # E|N(mu, sigma^2)| with sigma = exp(log_sigma).
    # Divide/sqrt-free and only 2 exp + 1 erf per element (sigma folded into
    # the exponent of term1 instead of a third exp).
    inv_sigma = jnp.exp(-log_sigma)                    # EUP
    r = mu * inv_sigma                                 # mu / sigma
    term1 = jnp.float32(_SQRT_2_OVER_PI) * jnp.exp(log_sigma - 0.5 * r * r)
    term2 = mu * jax.lax.erf(r * jnp.float32(_INV_SQRT2))
    return term1 + term2


def _spike_slab_kernel_packed(x_ref, w_ref, b_ref, out_ref, *, d_y, d_yp):
    """Fused kernel, spike-logit column packed into padded lane d_y of the mu block."""
    x = x_ref[...]
    # One fused affine map on the MXU: cols [0:d_yp)=mu (lane d_y = spike logit),
    # [d_yp:2*d_yp)=log_sigma.
    z = jnp.dot(x, w_ref[...], preferred_element_type=jnp.float32) + b_ref[...]
    mu = z[:, :d_yp]
    log_sigma = jnp.clip(z[:, d_yp:], -_LOG_SIGMA_CLAMP, _LOG_SIGMA_CLAMP)

    # Extract the spike logit from padded lane d_y via a masked lane-reduce
    # (select on VPU + reduce on XLU; avoids an unaligned 1-lane value slice).
    lane = jax.lax.broadcasted_iota(jnp.int32, mu.shape, dimension=1)
    spike_logit = jnp.sum(jnp.where(lane == d_y, mu, 0.0), axis=-1, keepdims=True)
    spike_p = jax.nn.sigmoid(spike_logit)              # (tm, 1)

    out_ref[...] = (spike_p * _folded_normal_mean(mu, log_sigma)).astype(out_ref.dtype)


def _spike_slab_kernel_reduce(x_ref, w_ref, b_ref, wspk_ref, bspk_ref, out_ref, *, d_yp):
    """Fused kernel for d_y % 128 == 0: spike logit via VPU mul + XLU lane reduce."""
    x = x_ref[...]
    z = jnp.dot(x, w_ref[...], preferred_element_type=jnp.float32) + b_ref[...]
    mu = z[:, :d_yp]
    log_sigma = jnp.clip(z[:, d_yp:], -_LOG_SIGMA_CLAMP, _LOG_SIGMA_CLAMP)

    # No free padded lane -> spike logit = sum_k x[:,k]*w_spk[k] + b_spk, done on
    # the VPU/XLU instead of a dedicated 128-wide MXU column block.
    spike_logit = jnp.sum(x * wspk_ref[...], axis=-1, keepdims=True) + bspk_ref[...]
    spike_p = jax.nn.sigmoid(spike_logit)

    out_ref[...] = (spike_p * _folded_normal_mean(mu, log_sigma)).astype(out_ref.dtype)


def make_fused_params(w_mu, b_mu, w_sig, b_sig, w_spk, b_spk):
    """Build the fused, lane-aligned weight/bias slabs ONCE (hoisted out of forward)."""
    f32 = jnp.float32
    d_x, d_y = w_mu.shape
    d_yp = _round_up(d_y, 128)
    packed = (d_y % 128) != 0

    def pad_cols(a):
        return jnp.pad(a.astype(f32), ((0, 0), (0, d_yp - a.shape[1])))

    w_mu_p, b_mu_p = pad_cols(w_mu), pad_cols(b_mu)
    w_sig_p, b_sig_p = pad_cols(w_sig), pad_cols(b_sig)

    params = {"d_x": d_x, "d_y": d_y, "d_yp": d_yp, "packed": packed}
    if packed:
        # Reuse one already-wasted padded lane of the mu block for the spike logit.
        w_mu_p = w_mu_p.at[:, d_y].set(w_spk[:, 0].astype(f32))
        b_mu_p = b_mu_p.at[:, d_y].set(b_spk[:, 0].astype(f32))
    else:
        params["w_spk_row"] = w_spk.astype(f32).T.reshape(1, d_x)
        params["b_spk"] = b_spk.astype(f32).reshape(1, 1)

    params["w_all"] = jnp.concatenate([w_mu_p, w_sig_p], axis=1)   # (d_x, 2*d_yp)
    params["b_all"] = jnp.concatenate([b_mu_p, b_sig_p], axis=1)   # (1,   2*d_yp)
    return params


def _launch(x, params, tm_eff, grid, cfg, cost, single_buffer_weights):
    n, d_x = x.shape
    d_y, d_yp, packed = params["d_y"], params["d_yp"], params["packed"]
    n_cols = 2 * d_yp

    def resident(shape):
        # Constant-index blocks never re-DMA; single-buffer them to reclaim VMEM.
        if single_buffer_weights:
            return pl.BlockSpec(shape, lambda i: (0, 0), pipeline_mode=pl.Buffered(1))
        return pl.BlockSpec(shape, lambda i: (0, 0))

    in_specs = [
        pl.BlockSpec((tm_eff, d_x), lambda i: (i, 0)),   # x row tile
        resident((d_x, n_cols)),                          # fused weights (resident)
        resident((1, n_cols)),                            # fused biases (resident)
    ]
    operands = [x, params["w_all"], params["b_all"]]
    if packed:
        kernel = functools.partial(_spike_slab_kernel_packed, d_y=d_y, d_yp=d_yp)
    else:
        kernel = functools.partial(_spike_slab_kernel_reduce, d_yp=d_yp)
        in_specs += [resident((1, d_x)), resident((1, 1))]
        operands += [params["w_spk_row"], params["b_spk"]]

    return pl.pallas_call(
        kernel,
        out_shape=jax.ShapeDtypeStruct((n, d_yp), jnp.float32),
        grid_spec=pltpu.PrefetchScalarGridSpec(
            num_scalar_prefetch=0,
            grid=grid,
            in_specs=in_specs,
            out_specs=pl.BlockSpec((tm_eff, d_yp), lambda i: (i, 0)),
        ),
        compiler_params=pltpu.CompilerParams(
            dimension_semantics=("parallel",),
            vmem_limit_bytes=cfg["vmem_limit"],
        ),
        cost_estimate=cost,
    )(*operands)


def cond_spike_slab_forward(x, params, *, tm=None):
    """E[y|x] of the conditional spike-and-slab distribution.

    Args:
      x:      (n, d_x) conditioning data.
      params: dict from make_fused_params() (fused weight/bias slabs, built once).
    Returns:
      (n, d_y) f32 conditional means = sigmoid(spike logit) * folded-normal mean.
    """
    n, d_x = x.shape
    d_y, d_yp = params["d_y"], params["d_yp"]
    n_cols = 2 * d_yp

    cfg = _tpu_defaults()
    if tm is None:
        tm = cfg["tm"]

    f32 = jnp.float32
    if x.dtype != f32:
        x = x.astype(f32)
    # TODO(synk): optional bf16 cast of x / weights (keep f32 accumulate + tail)
    # for HBM-bound large shapes, gated behind an accuracy check.

    # VMEM budget: x + out double-buffered, weights/biases single-buffered, plus
    # ~6 live (tm, n_cols) f32 elementwise intermediates (z/mu/log_sigma/r/terms).
    def vmem_bytes(t):
        return 4 * (2 * t * d_x + 2 * t * d_yp + d_x * n_cols + n_cols
                    + 6 * t * n_cols)

    budget = cfg["vmem_budget"]
    tm_eff = max(8, min(_round_up(tm, 8), _round_up(n, 8)))
    while tm_eff > 8 and vmem_bytes(tm_eff) > budget:
        tm_eff = max(8, _round_up(tm_eff // 2, 8))
    # TODO(synk): add a K (d_x) grid axis with a VMEM accumulator if the fused
    # weight slab alone ever approaches the VMEM budget (not needed at these shapes).

    if cfg["two_tc"] and n > 8:
        # Ensure >= 2 grid blocks so both v7x TensorCores get work.
        tm_eff = min(tm_eff, max(8, _round_up(pl.cdiv(n, 2), 8)))

    # Balance tiles instead of padding n up to a tile multiple.
    num_blocks = max(1, pl.cdiv(n, tm_eff))
    tm_eff = max(8, _round_up(pl.cdiv(n, num_blocks), 8))
    grid = (pl.cdiv(n, tm_eff),)

    packed = params["packed"]
    cost = pl.CostEstimate(
        flops=int(2 * n * d_x * n_cols + 8 * n * d_yp
                  + (0 if packed else 2 * n * d_x)),
        transcendentals=int(n * (3 * d_yp + 1)),          # 2 exp + erf per lane, sigmoid
        bytes_accessed=int(4 * (n * d_x + d_x * n_cols + n_cols + n * d_yp)),
    )

    try:
        out = _launch(x, params, tm_eff, grid, cfg, cost, single_buffer_weights=True)
    except Exception:
        # pl.Buffered(1) unsupported on this jax version -> default double buffering.
        out = _launch(x, params, tm_eff, grid, cfg, cost, single_buffer_weights=False)

    # Padded output lanes (cols d_y..d_yp) hold garbage by design; always slice.
    return out[:, :d_y]


def _reference_forward(x, w_mu, b_mu, w_sig, b_sig, w_spk, b_spk):
    mu = x @ w_mu + b_mu
    sigma = jnp.exp(x @ w_sig + b_sig)
    sigma_sq = sigma ** 2
    slab_mn = (
        sigma * jnp.sqrt(2.0 / jnp.pi) * jnp.exp(-mu ** 2 / (2.0 * sigma_sq))
        + mu * jax.scipy.special.erf(mu / jnp.sqrt(2.0 * sigma_sq))
    )
    spike_p = jax.nn.sigmoid(x @ w_spk + b_spk)          # (n, 1)
    return spike_p * slab_mn


if __name__ == "__main__":
    n_smps, d_x, d_y = 16, 32, 64

    key = jax.random.PRNGKey(0)
    kx, kwm, kbm, kws, kbs, kwp, kbp = jax.random.split(key, 7)

    x = jax.random.normal(kx, (n_smps, d_x), dtype=jnp.float32)
    w_mu = 0.1 * jax.random.normal(kwm, (d_x, d_y), dtype=jnp.float32)
    b_mu = 0.1 * jax.random.normal(kbm, (1, d_y), dtype=jnp.float32)
    w_sig = 0.1 * jax.random.normal(kws, (d_x, d_y), dtype=jnp.float32)
    b_sig = 0.1 * jax.random.normal(kbs, (1, d_y), dtype=jnp.float32)
    w_spk = 0.1 * jax.random.normal(kwp, (d_x, 1), dtype=jnp.float32)
    b_spk = 0.1 * jax.random.normal(kbp, (1, 1), dtype=jnp.float32)

    # Fused weight/bias slabs built ONCE (hoisted out of the forward path).
    params = make_fused_params(w_mu, b_mu, w_sig, b_sig, w_spk, b_spk)

    out = cond_spike_slab_forward(x, params)
    out = jax.block_until_ready(out)

    ref = _reference_forward(x, w_mu, b_mu, w_sig, b_sig, w_spk, b_spk)
    assert out.shape == (n_smps, d_y)
    assert jnp.allclose(out, ref, atol=1e-5, rtol=1e-4), "mismatch vs reference"

    print("KERNEL_OK")
</pallas_src>

<mosaic_0001>
module attributes {stable_mosaic.version = 11 : i64} {
  func.func @_spike_slab_kernel_packed(%arg0: i32, %arg1: memref<8x32xf32, #tpu.memory_space<vmem>>, %arg2: memref<32x256xf32, #tpu.memory_space<vmem>>, %arg3: memref<1x256xf32, #tpu.memory_space<vmem>>, %arg4: memref<8x128xf32, #tpu.memory_space<vmem>>) attributes {dimension_semantics = [#tpu.dimension_semantics<parallel>], iteration_bounds = array<i64: 2>, scalar_prefetch = 0 : i64, scratch_operands = 0 : i64, tpu.core_type = #tpu.core_type<tc>, window_params = [{transform_indices = @transform_0, window_bounds = array<i64: 8, 32>}, {pipeline_mode = #tpu.pipeline_mode<synchronous>, transform_indices = @transform_1, window_bounds = array<i64: 32, 256>}, {pipeline_mode = #tpu.pipeline_mode<synchronous>, transform_indices = @transform_2, window_bounds = array<i64: 1, 256>}, {transform_indices = @transform_3, window_bounds = array<i64: 8, 128>}]} {
    %c0 = arith.constant 0 : index
    %c0_0 = arith.constant 0 : index
    %0 = vector.load %arg1[%c0, %c0_0] : memref<8x32xf32, #tpu.memory_space<vmem>>, vector<8x32xf32>
    %c0_1 = arith.constant 0 : index
    %c0_2 = arith.constant 0 : index
    %1 = vector.load %arg2[%c0_1, %c0_2] : memref<32x256xf32, #tpu.memory_space<vmem>>, vector<32x256xf32>
    %cst = arith.constant dense<0.000000e+00> : vector<8x256xf32>
    %2 = tpu.matmul %0, %1, %cst {dimension_numbers = #tpu.dot_dimension_numbers<[1], [0], [0], [1], [0, 0, 1, 1], [], []>} : vector<8x32xf32>, vector<32x256xf32>, vector<8x256xf32> -> vector<8x256xf32>
    %c0_3 = arith.constant 0 : index
    %c0_4 = arith.constant 0 : index
    %3 = vector.load %arg3[%c0_3, %c0_4] : memref<1x256xf32, #tpu.memory_space<vmem>>, vector<1x256xf32>
    %4 = vector.broadcast %3 : vector<1x256xf32> to vector<8x256xf32>
    %5 = arith.addf %2, %4 : vector<8x256xf32>
    %6 = vector.extract_strided_slice %5 {offsets = [0, 0], sizes = [8, 128], strides = [1, 1]} : vector<8x256xf32> to vector<8x128xf32>
    %7 = vector.extract_strided_slice %5 {offsets = [0, 128], sizes = [8, 128], strides = [1, 1]} : vector<8x256xf32> to vector<8x128xf32>
    %cst_5 = arith.constant -2.000000e+01 : f32
    %cst_6 = arith.constant 2.000000e+01 : f32
    %8 = vector.broadcast %cst_5 : f32 to vector<8x128xf32>
    %9 = arith.maximumf %8, %7 : vector<8x128xf32>
    %10 = vector.broadcast %cst_6 : f32 to vector<8x128xf32>
    %11 = arith.minimumf %10, %9 : vector<8x128xf32>
    %12 = tpu.iota {dimensions = array<i32: 1>} : vector<8x128xi32>
    %c64_i32 = arith.constant 64 : i32
    %13 = vector.broadcast %c64_i32 : i32 to vector<8x128xi32>
    %14 = arith.cmpi eq, %12, %13 : vector<8x128xi32>
    %cst_7 = arith.constant 0.000000e+00 : f32
    %15 = vector.broadcast %cst_7 : f32 to vector<8x128xf32>
    %16 = arith.select %14, %6, %15 : vector<8x128xi1>, vector<8x128xf32>
    %cst_8 = arith.constant dense<0.000000e+00> : vector<8xf32>
    %17 = vector.multi_reduction <add>, %16, %cst_8 [1] : vector<8x128xf32> to vector<8xf32>
    %18 = vector.shape_cast %17 : vector<8xf32> to vector<8x1xf32>
    %19 = arith.negf %18 : vector<8x1xf32>
    %20 = math.exp %19 : vector<8x1xf32>
    %cst_9 = arith.constant 1.000000e+00 : f32
    %21 = vector.broadcast %cst_9 : f32 to vector<8x1xf32>
    %22 = arith.addf %21, %20 : vector<8x1xf32>
    %23 = arith.divf %21, %22 : vector<8x1xf32>
    %cst_10 = arith.constant 0.000000e+00 : f32
    %24 = vector.broadcast %cst_10 : f32 to vector<8x128xf32>
    %25 = arith.subf %24, %11 : vector<8x128xf32>
    %26 = math.exp %25 : vector<8x128xf32>
    %27 = arith.mulf %6, %26 : vector<8x128xf32>
    %cst_11 = arith.constant 5.000000e-01 : f32
    %28 = vector.broadcast %cst_11 : f32 to vector<8x128xf32>
    %29 = arith.mulf %28, %27 : vector<8x128xf32>
    %30 = arith.mulf %29, %27 : vector<8x128xf32>
    %31 = arith.subf %11, %30 : vector<8x128xf32>
    %32 = math.exp %31 : vector<8x128xf32>
    %cst_12 = arith.constant 0.797884583 : f32
    %33 = vector.broadcast %cst_12 : f32 to vector<8x128xf32>
    %34 = arith.mulf %33, %32 : vector<8x128xf32>
    %cst_13 = arith.constant 0.707106769 : f32
    %35 = vector.broadcast %cst_13 : f32 to vector<8x128xf32>
    %36 = arith.mulf %27, %35 : vector<8x128xf32>
    %37 = math.erf %36 : vector<8x128xf32>
    %38 = arith.mulf %6, %37 : vector<8x128xf32>
    %39 = arith.addf %34, %38 : vector<8x128xf32>
    %40 = vector.broadcast %23 : vector<8x1xf32> to vector<8x128xf32>
    %41 = arith.mulf %40, %39 : vector<8x128xf32>
    %c0_14 = arith.constant 0 : index
    %c0_15 = arith.constant 0 : index
    %42 = vector.load %arg4[%c0_14, %c0_15] : memref<8x128xf32, #tpu.memory_space<vmem>>, vector<8x128xf32>
    tpu.vector_store %arg4[%c0_14, %c0_15], %41 {strides = array<i32>} : memref<8x128xf32, #tpu.memory_space<vmem>>, vector<8x128xf32>,
    return
  }
  func.func @transform_0(%arg0: i32) -> (i32, i32) {
    %c0_i32 = arith.constant 0 : i32
    %c0_i32_0 = arith.constant 0 : i32
    return %arg0, %c0_i32 : i32, i32
  }
  func.func @transform_1(%arg0: i32) -> (i32, i32) {
    %c0_i32 = arith.constant 0 : i32
    %c0_i32_0 = arith.constant 0 : i32
    %c0_i32_1 = arith.constant 0 : i32
    return %c0_i32, %c0_i32_0 : i32, i32
  }
  func.func @transform_2(%arg0: i32) -> (i32, i32) {
    %c0_i32 = arith.constant 0 : i32
    %c0_i32_0 = arith.constant 0 : i32
    %c0_i32_1 = arith.constant 0 : i32
    return %c0_i32, %c0_i32_0 : i32, i32
  }
  func.func @transform_3(%arg0: i32) -> (i32, i32) {
    %c0_i32 = arith.constant 0 : i32
    %c0_i32_0 = arith.constant 0 : i32
    return %arg0, %c0_i32 : i32, i32
  }
}

module attributes {stable_mosaic.version = 11 : i64} {
  func.func @_spike_slab_kernel_packed(%arg0: i32, %arg1: memref<8x32xf32, #tpu.memory_space<vmem>>, %arg2: memref<32x256xf32, #tpu.memory_space<vmem>>, %arg3: memref<1x256xf32, #tpu.memory_space<vmem>>, %arg4: memref<8x128xf32, #tpu.memory_space<vmem>>) attributes {dimension_semantics = [#tpu.dimension_semantics<parallel>], iteration_bounds = array<i64: 2>, scalar_prefetch = 0 : i64, scratch_operands = 0 : i64, tpu.core_type = #tpu.core_type<tc>, window_params = [{transform_indices = @transform_0, window_bounds = array<i64: 8, 32>}, {pipeline_mode = #tpu.pipeline_mode<synchronous>, transform_indices = @transform_1, window_bounds = array<i64: 32, 256>}, {pipeline_mode = #tpu.pipeline_mode<synchronous>, transform_indices = @transform_2, window_bounds = array<i64: 1, 256>}, {transform_indices = @transform_3, window_bounds = array<i64: 8, 128>}]} {
    %c0 = arith.constant 0 : index
    %c0_0 = arith.constant 0 : index
    %0 = vector.load %arg1[%c0, %c0_0] : memref<8x32xf32, #tpu.memory_space<vmem>>, vector<8x32xf32>
    %c0_1 = arith.constant 0 : index
    %c0_2 = arith.constant 0 : index
    %1 = vector.load %arg2[%c0_1, %c0_2] : memref<32x256xf32, #tpu.memory_space<vmem>>, vector<32x256xf32>
    %cst = arith.constant dense<0.000000e+00> : vector<8x256xf32>
    %2 = tpu.matmul %0, %1, %cst {dimension_numbers = #tpu.dot_dimension_numbers<[1], [0], [0], [1], [0, 0, 1, 1], [], []>} : vector<8x32xf32>, vector<32x256xf32>, vector<8x256xf32> -> vector<8x256xf32>
    %c0_3 = arith.constant 0 : index
    %c0_4 = arith.constant 0 : index
    %3 = vector.load %arg3[%c0_3, %c0_4] : memref<1x256xf32, #tpu.memory_space<vmem>>, vector<1x256xf32>
    %4 = vector.broadcast %3 : vector<1x256xf32> to vector<8x256xf32>
    %5 = arith.addf %2, %4 : vector<8x256xf32>
    %6 = vector.extract_strided_slice %5 {offsets = [0, 0], sizes = [8, 128], strides = [1, 1]} : vector<8x256xf32> to vector<8x128xf32>
    %7 = vector.extract_strided_slice %5 {offsets = [0, 128], sizes = [8, 128], strides = [1, 1]} : vector<8x256xf32> to vector<8x128xf32>
    %cst_5 = arith.constant -2.000000e+01 : f32
    %cst_6 = arith.constant 2.000000e+01 : f32
    %8 = vector.broadcast %cst_5 : f32 to vector<8x128xf32>
    %9 = arith.maximumf %8, %7 : vector<8x128xf32>
    %10 = vector.broadcast %cst_6 : f32 to vector<8x128xf32>
    %11 = arith.minimumf %10, %9 : vector<8x128xf32>
    %12 = tpu.iota {dimensions = array<i32: 1>} : vector<8x128xi32>
    %c64_i32 = arith.constant 64 : i32
    %13 = vector.broadcast %c64_i32 : i32 to vector<8x128xi32>
    %14 = arith.cmpi eq, %12, %13 : vector<8x128xi32>
    %cst_7 = arith.constant 0.000000e+00 : f32
    %15 = vector.broadcast %cst_7 : f32 to vector<8x128xf32>
    %16 = arith.select %14, %6, %15 : vector<8x128xi1>, vector<8x128xf32>
    %cst_8 = arith.constant dense<0.000000e+00> : vector<8xf32>
    %17 = vector.multi_reduction <add>, %16, %cst_8 [1] : vector<8x128xf32> to vector<8xf32>
    %18 = vector.shape_cast %17 : vector<8xf32> to vector<8x1xf32>
    %19 = arith.negf %18 : vector<8x1xf32>
    %20 = math.exp %19 : vector<8x1xf32>
    %cst_9 = arith.constant 1.000000e+00 : f32
    %21 = vector.broadcast %cst_9 : f32 to vector<8x1xf32>
    %22 = arith.addf %21, %20 : vector<8x1xf32>
    %23 = arith.divf %21, %22 : vector<8x1xf32>
    %cst_10 = arith.constant 0.000000e+00 : f32
    %24 = vector.broadcast %cst_10 : f32 to vector<8x128xf32>
    %25 = arith.subf %24, %11 : vector<8x128xf32>
    %26 = math.exp %25 : vector<8x128xf32>
    %27 = arith.mulf %6, %26 : vector<8x128xf32>
    %cst_11 = arith.constant 5.000000e-01 : f32
    %28 = vector.broadcast %cst_11 : f32 to vector<8x128xf32>
    %29 = arith.mulf %28, %27 : vector<8x128xf32>
    %30 = arith.mulf %29, %27 : vector<8x128xf32>
    %31 = arith.subf %11, %30 : vector<8x128xf32>
    %32 = math.exp %31 : vector<8x128xf32>
    %cst_12 = arith.constant 0.797884583 : f32
    %33 = vector.broadcast %cst_12 : f32 to vector<8x128xf32>
    %34 = arith.mulf %33, %32 : vector<8x128xf32>
    %cst_13 = arith.constant 0.707106769 : f32
    %35 = vector.broadcast %cst_13 : f32 to vector<8x128xf32>
    %36 = arith.mulf %27, %35 : vector<8x128xf32>
    %37 = math.erf %36 : vector<8x128xf32>
    %38 = arith.mulf %6, %37 : vector<8x128xf32>
    %39 = arith.addf %34, %38 : vector<8x128xf32>
    %40 = vector.broadcast %23 : vector<8x1xf32> to vector<8x128xf32>
    %41 = arith.mulf %40, %39 : vector<8x128xf32>
    %c0_14 = arith.constant 0 : index
    %c0_15 = arith.constant 0 : index
    %42 = vector.load %arg4[%c0_14, %c0_15] : memref<8x128xf32, #tpu.memory_space<vmem>>, vector<8x128xf32>
    tpu.vector_store %arg4[%c0_14, %c0_15], %41 {strides = array<i32>} : memref<8x128xf32, #tpu.memory_space<vmem>>, vector<8x128xf32>,
    return
  }
  func.func @transform_0(%arg0: i32) -> (i32, i32) {
    %c0_i32 = arith.constant 0 : i32
    %c0_i32_0 = arith.constant 0 : i32
    return %arg0, %c0_i32 : i32, i32
  }
  func.func @transform_1(%arg0: i32) -> (i32, i32) {
    %c0_i32 = arith.constant 0 : i32
    %c0_i32_0 = arith.constant 0 : i32
    %c0_i32_1 = arith.constant 0 : i32
    return %c0_i32, %c0_i32_0 : i32, i32
  }
  func.func @transform_2(%arg0: i32) -> (i32, i32) {
    %c0_i32 = arith.constant 0 : i32
    %c0_i32_0 = arith.constant 0 : i32
    %c0_i32_1 = arith.constant 0 : i32
    return %c0_i32, %c0_i32_0 : i32, i32
  }
  func.func @transform_3(%arg0: i32) -> (i32, i32) {
    %c0_i32 = arith.constant 0 : i32
    %c0_i32_0 = arith.constant 0 : i32
    return %arg0, %c0_i32 : i32, i32
  }
}

</mosaic_0001>

<llo_original>
// kernel: tpu_custom_call.1
$region0: #{tpu_custom_call.1}
  #allocation0 [shape = 'u32[]', space=smem, size = 0x4, offset = 0x4, fixed_abs, tag = 'smem constant byte address 0x4 - core index']
  #allocation1 [shape = 'u32[144,128]{1,0:T(1,128)}', space=vmem, size = 0x12000, scoped, tag = 'internal scratch']
  %s0 = inlined_call_operand.hbm [shape: f32[16,32], index: 0, kind: input, shape index: {}]
  %s1 = inlined_call_operand.hbm [shape: f32[32,256], index: 1, kind: input, shape index: {}]
  %s2 = inlined_call_operand.vmem [shape: f32[1,256], index: 2, kind: input, shape index: {}]
  %s3 = inlined_call_operand.hbm [shape: f32[16,128], index: 3, kind: output, shape index: {}]
  %s4 = sld [smem:[#allocation0]]
  $region53: #{tpu_custom_call.1} parent=0
    _
  %s6 = ssub.s32 1, %s4
  %s7 = scalar_select 0, %s6, %s4
  $region1: #{tpu_custom_call.1} parent=0
    #allocation2 [shape = 'u8[8192]{0}', space=vmem, size = 0x2000, scoped, tag = 'input window, operand 0']
    #allocation3 [shape = 's32[2]{0}', space=sflag, size = 0x8, scoped, tag = 'scoped memory for tpu_custom_call.1']
    #allocation4 [shape = 's32[2]{0}', space=sflag, size = 0x8, scoped, tag = 'scoped memory for tpu_custom_call.1']
    #allocation5 [shape = 'u8[32768]{0}', space=vmem, size = 0x8000, scoped, tag = 'input window, operand 1, single buffered']
    #allocation6 [shape = 's32[1]{0}', space=sflag, size = 0x4, scoped, tag = 'scoped memory for tpu_custom_call.1']
    #allocation7 [shape = 'u8[8192]{0}', space=vmem, size = 0x2000, scoped, tag = 'output window, operand 0']
    %8 = vsyncpa [#allocation3], 0
    %s9 = scalar_lea.sflag [#allocation3], 1
    %10 = vsyncpa %s9, 0
    %11 = vsyncpa [#allocation6], 0
    %12 = vsyncpa [#allocation4], 0
    %s13 = scalar_lea.sflag [#allocation4], 1
    %14 = vsyncpa %s13, 0
    loop: start=0, step=1, limit=4
    $region2: #{tpu_custom_call.1} parent=1 // loop_pre_header
      _
    $region3: #{tpu_custom_call.1} parent=1 // loop_header
      %s16 = sphi 0, %s20
      %p17 = scmp.ge.s32.totalorder %s16, 4
      %s26 = sphi 0, %s28
      %s29 = sphi 0, %s26
      %s30 = sphi 0, %s29
      %s46 = sphi 0, %s30
      %s50 = sphi 0, %s50
      %s52 = sphi 0, %s50
      %s53 = sphi 0, %s52
      %s67 = sphi 0, %s53
      %s71 = sphi 0, %s71
      %s73 = sphi 0, %s71
      %s74 = sphi 0, %s73
      %s88 = sphi 0, %s74
      %s94 = sphi 0, %s96
      %s97 = sphi 0, %s94
      %s98 = sphi 0, %s97
      %s114 = sphi 0, %s98
    $region4: #{tpu_custom_call.1} parent=1 // loop_header_branch
      %19 = sbr.rel (%p17) target = $region8
    $region5: #{tpu_custom_call.1} parent=1 // loop_body
      %s21 = ssub.s32 %s16, 1
      %s22 = ssub.s32 %s16, 2
      %s23 = sadd.s32 %s16, 1
      %s24 = ssub.s32 %s16, %s23
      %p25 = scmp.eq.s32.totalorder %s24, 0
      %s27 = sadd.s32 %s26, 1
      %s28 = scalar_select %p25, %s26, %s27
      %p31 = pneg %p25
      %p32 = scmp.eq.s32.totalorder %s16, 1
      %p33 = por %p31, %p32
      %p34 = scmp.ne.s32.totalorder %s26, %s29
      %p35 = scmp.eq.s32.totalorder %s16, 0
      %p36 = por %p34, %p35
      %p37 = scmp.ne.s32.totalorder %s26, %s29
      %p38 = scmp.eq.s32.totalorder %s21, 1
      %p39 = por %p37, %p38
      %p40 = scmp.ne.s32.totalorder %s29, %s30
      %p41 = scmp.eq.s32.totalorder %s21, 0
      %p42 = por %p40, %p41
      %p43 = scmp.ne.s32.totalorder %s29, %s30
      %p44 = scmp.eq.s32.totalorder %s22, 1
      %p45 = por %p43, %p44
      %p47 = scmp.ne.s32.totalorder %s30, %s46
      %p48 = scmp.eq.s32.totalorder %s22, 0
      %p49 = por %p47, %p48
      %s51 = sadd.s32 %s50, 1
      %p54 = scmp.eq.s32.totalorder %s16, 1
      %p55 = scmp.ne.s32.totalorder %s50, %s52
      %p56 = scmp.eq.s32.totalorder %s16, 0
      %p57 = por %p55, %p56
      %p58 = scmp.ne.s32.totalorder %s50, %s52
      %p59 = scmp.eq.s32.totalorder %s21, 1
      %p60 = por %p58, %p59
      %p61 = scmp.ne.s32.totalorder %s52, %s53
      %p62 = scmp.eq.s32.totalorder %s21, 0
      %p63 = por %p61, %p62
      %p64 = scmp.ne.s32.totalorder %s52, %s53
      %p65 = scmp.eq.s32.totalorder %s22, 1
      %p66 = por %p64, %p65
      %p68 = scmp.ne.s32.totalorder %s53, %s67
      %p69 = scmp.eq.s32.totalorder %s22, 0
      %p70 = por %p68, %p69
      %s72 = sadd.s32 %s71, 1
      %p75 = scmp.eq.s32.totalorder %s16, 1
      %p76 = scmp.ne.s32.totalorder %s71, %s73
      %p77 = scmp.eq.s32.totalorder %s16, 0
      %p78 = por %p76, %p77
      %p79 = scmp.ne.s32.totalorder %s71, %s73
      %p80 = scmp.eq.s32.totalorder %s21, 1
      %p81 = por %p79, %p80
      %p82 = scmp.ne.s32.totalorder %s73, %s74
      %p83 = scmp.eq.s32.totalorder %s21, 0
      %p84 = por %p82, %p83
      %p85 = scmp.ne.s32.totalorder %s73, %s74
      %p86 = scmp.eq.s32.totalorder %s22, 1
      %p87 = por %p85, %p86
      %p89 = scmp.ne.s32.totalorder %s74, %s88
      %p90 = scmp.eq.s32.totalorder %s22, 0
      %p91 = por %p89, %p90
      %s92 = ssub.s32 %s16, %s23
      %p93 = scmp.eq.s32.totalorder %s92, 0
      %s95 = sadd.s32 %s94, 1
      %s96 = scalar_select %p93, %s94, %s95
      %p99 = pneg %p93
      %p100 = scmp.eq.s32.totalorder %s16, 1
      %p101 = por %p99, %p100
      %p102 = scmp.ne.s32.totalorder %s94, %s97
      %p103 = scmp.eq.s32.totalorder %s16, 0
      %p104 = por %p102, %p103
      %p105 = scmp.ne.s32.totalorder %s94, %s97
      %p106 = scmp.eq.s32.totalorder %s21, 1
      %p107 = por %p105, %p106
      %p108 = scmp.ne.s32.totalorder %s97, %s98
      %p109 = scmp.eq.s32.totalorder %s21, 0
      %p110 = por %p108, %p109
      %p111 = scmp.ne.s32.totalorder %s97, %s98
      %p112 = scmp.eq.s32.totalorder %s22, 1
      %p113 = por %p111, %p112
      %p115 = scmp.ne.s32.totalorder %s98, %s114
      %p116 = scmp.eq.s32.totalorder %s22, 0
      %p117 = por %p115, %p116
      %p118 = scmp.le.s32.totalorder 1, %s16
      %p119 = scmp.lt.s32.totalorder %s16, 3
      %p120 = pnand %p118, %p119
      %p121 = pneg %p120
      // Predicated region
      $region9: #{tpu_custom_call.1} parent=5 // pred_check
        _
      $region10: #{tpu_custom_call.1} parent=5 // pred_check_branch
        %123 = sbr.rel (%p120) target = $region12
      $region11: #{tpu_custom_call.1} parent=5 // pred_region
        %s124 = ssub.s32 %s16, 1
        // Predicated region
        $region13: #{tpu_custom_call.1} parent=11 // pred_check
          %p125 = pneg %p63
        $region14: #{tpu_custom_call.1} parent=11 // pred_check_branch
          %127 = sbr.rel (%p125) target = $region16
        $region15: #{tpu_custom_call.1} parent=11 // pred_region
          %s129 = ssub.s32 1024, 1024
          %130 = vsyncadd [#allocation6], %s129
          %s131 = sshll.u32 [#allocation5], 4
          %s132 = int_to_ptr.vmem [resolvable:$true] %s131
          %137 = dma.hbm_to_vmem [thread:$0]  %s1, 1024, %s132, [#allocation6], 256, 256, 16
        $region16: #{tpu_custom_call.1} parent=11 // pred_fallthru
          _
        // Predicated region
        $region17: #{tpu_custom_call.1} parent=11 // pred_check
          %p138 = pneg %p84
        $region18: #{tpu_custom_call.1} parent=11 // pred_check_branch
          %140 = sbr.rel (%p138) target = $region20
        $region19: #{tpu_custom_call.1} parent=11 // pred_region
          _
        $region20: #{tpu_custom_call.1} parent=11 // pred_fallthru
          _
      $region12: #{tpu_custom_call.1} parent=5 // pred_fallthru
        _
      %p141 = scmp.lt.s32.totalorder %s16, 2
      // Predicated region
      $region21: #{tpu_custom_call.1} parent=5 // pred_check
        %p142 = pneg %p141
      $region22: #{tpu_custom_call.1} parent=5 // pred_check_branch
        %144 = sbr.rel (%p142) target = $region24
      $region23: #{tpu_custom_call.1} parent=5 // pred_region
        // Predicated region
        $region25: #{tpu_custom_call.1} parent=23 // pred_check
          %p145 = pneg %p36
        $region26: #{tpu_custom_call.1} parent=23 // pred_check_branch
          %147 = sbr.rel (%p145) target = $region28
        $region27: #{tpu_custom_call.1} parent=23 // pred_region
          %s148 = sand.u32 %s26, 1
          %s149 = scalar_lea.sflag [#allocation3], %s148
          %s150 = sand.u32 %s26, 1
          %s151 = smul.addr %s150, 8
          %s152 = scalar_lea.vmem [#allocation2], %s151
          %s154 = ssub.s32 128, 128
          %155 = vsyncadd %s149, %s154
          %s156 = smul.addr %s16, 128
          %s157 = scalar_lea.hbm %s0, %s156
          %s159 = sshll.u32 %s152, 4
          %s160 = int_to_ptr.vmem [resolvable:$true] %s159
          %162 = dma.hbm_to_vmem [thread:$0]  %s157, 128, %s160, %s149
        $region28: #{tpu_custom_call.1} parent=23 // pred_fallthru
          _
      $region24: #{tpu_custom_call.1} parent=5 // pred_fallthru
        _
      %p163 = scmp.le.s32.totalorder 1, %s16
      %p164 = scmp.lt.s32.totalorder %s16, 3
      %p165 = pnand %p163, %p164
      %p166 = pneg %p165
      // Predicated region
      $region29: #{tpu_custom_call.1} parent=5 // pred_check
        _
      $region30: #{tpu_custom_call.1} parent=5 // pred_check_branch
        %168 = sbr.rel (%p165) target = $region32
      $region31: #{tpu_custom_call.1} parent=5 // pred_region
        %s169 = ssub.s32 %s16, 1
        %s170 = sand.u32 %s29, 1
        %s171 = scalar_lea.sflag [#allocation3], %s170
        %s172 = sand.u32 %s29, 1
        %s173 = smul.addr %s172, 8
        %s174 = scalar_lea.vmem [#allocation2], %s173
        // Predicated region
        $region33: #{tpu_custom_call.1} parent=31 // pred_check
          %p175 = pneg %p42
        $region34: #{tpu_custom_call.1} parent=31 // pred_check_branch
          %177 = sbr.rel (%p175) target = $region36
        $region35: #{tpu_custom_call.1} parent=31 // pred_region
          %178 = dma.done %s171, 128
        $region36: #{tpu_custom_call.1} parent=31 // pred_fallthru
          _
        // Predicated region
        $region37: #{tpu_custom_call.1} parent=31 // pred_check
          %p179 = pneg %p63
        $region38: #{tpu_custom_call.1} parent=31 // pred_check_branch
          %181 = sbr.rel (%p179) target = $region40
        $region39: #{tpu_custom_call.1} parent=31 // pred_region
          %182 = dma.done [#allocation6], 1024
        $region40: #{tpu_custom_call.1} parent=31 // pred_fallthru
          _
        %s183 = sand.u32 %s29, 1
        %s184 = scalar_lea.sflag [#allocation3], %s183
        %s185 = sand.u32 %s29, 1
        %s186 = smul.addr %s185, 8
        %s187 = scalar_lea.vmem [#allocation2], %s186
        %p188 = pneg %p42
        %p189 = pneg %p39
        %p190 = pneg %p63
        %p191 = pneg %p60
        %p192 = pneg %p84
        %p193 = pneg %p81
        %p194 = pneg %p110
        %p195 = pneg %p107
        %s196 = sand.u32 %s97, 1
        %s197 = scalar_lea.sflag [#allocation4], %s196
        %s198 = sand.u32 %s97, 1
        %s199 = smul.addr %s198, 8
        %s200 = scalar_lea.vmem [#allocation7], %s199
        %v201 = vld [vmem:[%s174] sm:$0xff]
        %v202 = vld [vmem:[#allocation5] sm:$0xff]
        %v203 = vld [vmem:[#allocation5 + $0x8] sm:$0xff]
        %v204 = vld [vmem:[#allocation5 + $0x10] sm:$0xff]
        %v205 = vld [vmem:[#allocation5 + $0x18] sm:$0xff]
        %v206 = vld [vmem:[#allocation5 + $0x20] sm:$0xff]
        %v207 = vld [vmem:[#allocation5 + $0x28] sm:$0xff]
        %v208 = vld [vmem:[#allocation5 + $0x30] sm:$0xff]
        %v209 = vld [vmem:[#allocation5 + $0x38] sm:$0xff]
        %v210 = vld [vmem:[%s2] sm:$0x3]
        %v212 = vlaneseq
        %v213 = vshrl.u32 %v212, 7
        %v214 = vsub.s32 0, %v213
        %v215 = vrot.slane %v210, %v214
        %v216 = vlaneseq
        %v217 = vshrl.u32 %v216, 7
        %v218 = vsub.s32 1, %v217
        %v219 = vrot.slane %v210, %v218
        %vm222 = vcmask 261120
        %v224 = vsel %vm222, %v201, 0
        %226 = vmatprep.subr.mxu0 0.0
        %227 = vmatpush1.msra.mxu0 0.0
        %228 = vmatprep.subr.mxu0 0.0
        %229 = vmatpush1.msra.mxu0 0.0
        %230 = vmatprep.subr.mxu0 0.0
        %231 = vmatpush1.msra.mxu0 0.0
        %232 = vmatprep.subr.mxu0 0.0
        %233 = vmatpush1.msra.mxu0 0.0
        %234 = vmatprep.subr.mxu0 0.0
        %235 = vmatpush1.msra.mxu0 0.0
        %236 = vmatprep.subr.mxu0 0.0
        %237 = vmatpush1.msra.mxu0 0.0
        %238 = vmatprep.subr.mxu0 0.0
        %239 = vmatpush1.msra.mxu0 0.0
        %240 = vmatprep.subr.mxu0 0.0
        %241 = vmatpush1.msra.mxu0 0.0
        %242 = vmatprep.subr.mxu0 0.0
        %243 = vmatpush1.msra.mxu0 0.0
        %244 = vmatprep.subr.mxu0 0.0
        %245 = vmatpush1.msra.mxu0 0.0
        %246 = vmatprep.subr.mxu0 0.0
        %247 = vmatpush1.msra.mxu0 0.0
        %248 = vmatprep.subr.mxu0 0.0
        %249 = vmatpush1.msra.mxu0 0.0
        %250 = vmatprep.subr.mxu0 %v209
        %251 = vmatpush1.msra.mxu0 %v208
        %252 = vmatprep.subr.mxu0 %v207
        %253 = vmatpush1.msra.mxu0 %v206
        %254 = vmatprep.subr.mxu0 %v205
        %255 = vmatpush1.msra.mxu0 %v204
        %256 = vmatprep.subr.mxu0 %v203
        %257 = vmatpush1.msra.mxu0 %v202
        %258 = vmatprep.subr.mxu0 0.0
        %259 = vmatpush2.msra.mxu0 0.0
        %260 = vmatprep.subr.mxu0 0.0
        %261 = vmatpush2.msra.mxu0 0.0
        %262 = vmatprep.subr.mxu0 0.0
        %263 = vmatpush2.msra.mxu0 0.0
        %264 = vmatprep.subr.mxu0 0.0
        %265 = vmatpush2.msra.mxu0 0.0
        %266 = vmatprep.subr.mxu0 0.0
        %267 = vmatpush2.msra.mxu0 0.0
        %268 = vmatprep.subr.mxu0 0.0
        %269 = vmatpush2.msra.mxu0 0.0
        %270 = vmatprep.subr.mxu0 0.0
        %271 = vmatpush2.msra.mxu0 0.0
        %272 = vmatprep.subr.mxu0 0.0
        %273 = vmatpush2.msra.mxu0 0.0
        %274 = vmatprep.subr.mxu0 0.0
        %275 = vmatpush2.msra.mxu0 0.0
        %276 = vmatprep.subr.mxu0 0.0
        %277 = vmatpush2.msra.mxu0 0.0
        %278 = vmatprep.subr.mxu0 0.0
        %279 = vmatpush2.msra.mxu0 0.0
        %280 = vmatprep.subr.mxu0 0.0
        %281 = vmatpush2.msra.mxu0 0.0
        %282 = vmatprep.subr.mxu0 0.0
        %283 = vmatpush2.msra.mxu0 0.0
        %284 = vmatprep.subr.mxu0 0.0
        %285 = vmatpush2.msra.mxu0 0.0
        %286 = vmatprep.subr.mxu0 0.0
        %287 = vmatpush2.msra.mxu0 0.0
        %288 = vmatprep.subr.mxu0 0.0
        %289 = vmatpush2.msra.mxu0 0.0
        %290 = vmatprep.mubr.f32.mxu0 0.0
        %291 = vmatmul.mubr.f32.gmra.mxu0 %v224
        %v292 = vpop.f32.mrf.mxu0
        %v293 = vadd.f32 %v215, %v292
        %v294 = vpop.f32.mrf.mxu0
        %v295 = vadd.f32 %v219, %v294
        %296 = vdwg.mxu0
        %v297 = vmax.f32 %v295, -20.0
        %v298 = vmin.f32 %v297, 20.0
        %v299 = vlaneseq
        %v300 = vand.u32 %v299, 127
        %vm301 = vcmp.eq.s32.totalorder %v300, 64
        %v302 = vsel %vm301, %v293, 0.0
        %303 = vadd.xlane.f32.xlu0 %v302
        %v304 = vpop.xlane.xlu0 %303
        %v305 = vxor.u32 %v304, 2147483648
        %v306 = vmul.f32 %v305, 1.442695
        %v307 = vpow.pop %v306
        %v308 = vadd.f32 %v307, 1.0
        %v309 = vrcp.pop %v308
        %v310 = vmul.f32 1.0, %v309
        %v311 = vsub.f32 0.0, %v298
        %v312 = vmul.f32 %v311, 1.442695
        %v313 = vpow.pop %v312
        %v314 = vmul.f32 %v293, %v313
        %v315 = vmul.f32 %v314, 0.5
        %v316 = vmul.f32 %v315, %v314
        %v317 = vsub.f32 %v298, %v316
        %v318 = vmul.f32 %v317, 1.442695
        %v319 = vpow.pop %v318
        %v320 = vmul.f32 %v319, 0.7978846
        %v321 = vmul.f32 %v314, 0.70710677
        %v322 = verf.f32.pop %v321
        %v323 = vmul.f32 %v293, %v322
        %v324 = vadd.f32 %v320, %v323
        %v325 = vmul.f32 %v310, %v324
        %326 = vst [vmem:[%s200] sm:$0xff] %v325
        %s327 = sand.u32 %s97, 1
        %s328 = scalar_lea.sflag [#allocation4], %s327
        %s329 = sand.u32 %s97, 1
        %s330 = smul.addr %s329, 8
        %s331 = scalar_lea.vmem [#allocation7], %s330
        // Predicated region
        $region41: #{tpu_custom_call.1} parent=31 // pred_check
          %p332 = pneg %p107
        $region42: #{tpu_custom_call.1} parent=31 // pred_check_branch
          %334 = sbr.rel (%p332) target = $region44
        $region43: #{tpu_custom_call.1} parent=31 // pred_region
          %s336 = ssub.s32 128, 128
          %337 = vsyncadd %s328, %s336
          %s338 = smul.addr %s21, 128
          %s339 = scalar_lea.hbm %s3, %s338
          %s341 = sshll.u32 %s331, 4
          %s342 = int_to_ptr.vmem [resolvable:$true] %s341
          %344 = dma.vmem_to_hbm [thread:$0]  %s342, 128, %s339, %s328
        $region44: #{tpu_custom_call.1} parent=31 // pred_fallthru
          _
      $region32: #{tpu_custom_call.1} parent=5 // pred_fallthru
        _
      %p345 = scmp.le.s32.totalorder 2, %s16
      // Predicated region
      $region45: #{tpu_custom_call.1} parent=5 // pred_check
        %p346 = pneg %p345
      $region46: #{tpu_custom_call.1} parent=5 // pred_check_branch
        %348 = sbr.rel (%p346) target = $region48
      $region47: #{tpu_custom_call.1} parent=5 // pred_region
        %s349 = ssub.s32 %s16, 2
        // Predicated region
        $region49: #{tpu_custom_call.1} parent=47 // pred_check
          %p350 = pneg %p113
        $region50: #{tpu_custom_call.1} parent=47 // pred_check_branch
          %352 = sbr.rel (%p350) target = $region52
        $region51: #{tpu_custom_call.1} parent=47 // pred_region
          %s353 = sand.u32 %s98, 1
          %s354 = scalar_lea.sflag [#allocation4], %s353
          %s355 = sand.u32 %s98, 1
          %s356 = smul.addr %s355, 8
          %s357 = scalar_lea.vmem [#allocation7], %s356
          %358 = dma.done %s354, 128
        $region52: #{tpu_custom_call.1} parent=47 // pred_fallthru
          _
      $region48: #{tpu_custom_call.1} parent=5 // pred_fallthru
        _
    $region6: #{tpu_custom_call.1} parent=1 // loop_footer
      %s20 = sadd.s32 1, %s16
    $region7: #{tpu_custom_call.1} parent=1 // loop_footer_branch
      %15 = sbr.rel target = $region3
    $region8: #{tpu_custom_call.1} parent=1 // loop_exit
      _
    %359 = vsyncpa [#allocation3], 1
    %s360 = scalar_lea.sflag [#allocation3], 1
    %361 = vsyncpa %s360, 1
    %362 = vsyncpa [#allocation6], 1
    %363 = vsyncpa [#allocation4], 1
    %s364 = scalar_lea.sflag [#allocation4], 1
    %365 = vsyncpa %s364, 1

// kernel: tpu_custom_call.1
$region0: #{tpu_custom_call.1}
  #allocation0 [shape = 'u32[]', space=smem, size = 0x4, offset = 0x4, fixed_abs, tag = 'smem constant byte address 0x4 - core index']
  #allocation1 [shape = 'u32[144,128]{1,0:T(1,128)}', space=vmem, size = 0x12000, scoped, tag = 'internal scratch']
  %s0 = inlined_call_operand.hbm [shape: f32[16,32], index: 0, kind: input, shape index: {}]
  %s1 = inlined_call_operand.hbm [shape: f32[32,256], index: 1, kind: input, shape index: {}]
  %s2 = inlined_call_operand.vmem [shape: f32[1,256], index: 2, kind: input, shape index: {}]
  %s3 = inlined_call_operand.hbm [shape: f32[16,128], index: 3, kind: output, shape index: {}]
  %s4 = sld [smem:[#allocation0]]
  $region53: #{tpu_custom_call.1} parent=0
    _
  %s6 = ssub.s32 1, %s4
  %s7 = scalar_select 0, %s6, %s4
  $region1: #{tpu_custom_call.1} parent=0
    #allocation2 [shape = 'u8[8192]{0}', space=vmem, size = 0x2000, scoped, tag = 'input window, operand 0']
    #allocation3 [shape = 's32[2]{0}', space=sflag, size = 0x8, scoped, tag = 'scoped memory for tpu_custom_call.1']
    #allocation4 [shape = 's32[2]{0}', space=sflag, size = 0x8, scoped, tag = 'scoped memory for tpu_custom_call.1']
    #allocation5 [shape = 'u8[32768]{0}', space=vmem, size = 0x8000, scoped, tag = 'input window, operand 1, single buffered']
    #allocation6 [shape = 's32[1]{0}', space=sflag, size = 0x4, scoped, tag = 'scoped memory for tpu_custom_call.1']
    #allocation7 [shape = 'u8[8192]{0}', space=vmem, size = 0x2000, scoped, tag = 'output window, operand 0']
    %8 = vsyncpa [#allocation3], 0
    %s9 = scalar_lea.sflag [#allocation3], 1
    %10 = vsyncpa %s9, 0
    %11 = vsyncpa [#allocation6], 0
    %12 = vsyncpa [#allocation4], 0
    %s13 = scalar_lea.sflag [#allocation4], 1
    %14 = vsyncpa %s13, 0
    loop: start=0, step=1, limit=4
    $region2: #{tpu_custom_call.1} parent=1 // loop_pre_header
      _
    $region3: #{tpu_custom_call.1} parent=1 // loop_header
      %s16 = sphi 0, %s20
      %p17 = scmp.ge.s32.totalorder %s16, 4
      %s26 = sphi 0, %s28
      %s29 = sphi 0, %s26
      %s30 = sphi 0, %s29
      %s46 = sphi 0, %s30
      %s50 = sphi 0, %s50
      %s52 = sphi 0, %s50
      %s53 = sphi 0, %s52
      %s67 = sphi 0, %s53
      %s71 = sphi 0, %s71
      %s73 = sphi 0, %s71
      %s74 = sphi 0, %s73
      %s88 = sphi 0, %s74
      %s94 = sphi 0, %s96
      %s97 = sphi 0, %s94
      %s98 = sphi 0, %s97
      %s114 = sphi 0, %s98
    $region4: #{tpu_custom_call.1} parent=1 // loop_header_branch
      %19 = sbr.rel (%p17) target = $region8
    $region5: #{tpu_custom_call.1} parent=1 // loop_body
      %s21 = ssub.s32 %s16, 1
      %s22 = ssub.s32 %s16, 2
      %s23 = sadd.s32 %s16, 1
      %s24 = ssub.s32 %s16, %s23
      %p25 = scmp.eq.s32.totalorder %s24, 0
      %s27 = sadd.s32 %s26, 1
      %s28 = scalar_select %p25, %s26, %s27
      %p31 = pneg %p25
      %p32 = scmp.eq.s32.totalorder %s16, 1
      %p33 = por %p31, %p32
      %p34 = scmp.ne.s32.totalorder %s26, %s29
      %p35 = scmp.eq.s32.totalorder %s16, 0
      %p36 = por %p34, %p35
      %p37 = scmp.ne.s32.totalorder %s26, %s29
      %p38 = scmp.eq.s32.totalorder %s21, 1
      %p39 = por %p37, %p38
      %p40 = scmp.ne.s32.totalorder %s29, %s30
      %p41 = scmp.eq.s32.totalorder %s21, 0
      %p42 = por %p40, %p41
      %p43 = scmp.ne.s32.totalorder %s29, %s30
      %p44 = scmp.eq.s32.totalorder %s22, 1
      %p45 = por %p43, %p44
      %p47 = scmp.ne.s32.totalorder %s30, %s46
      %p48 = scmp.eq.s32.totalorder %s22, 0
      %p49 = por %p47, %p48
      %s51 = sadd.s32 %s50, 1
      %p54 = scmp.eq.s32.totalorder %s16, 1
      %p55 = scmp.ne.s32.totalorder %s50, %s52
      %p56 = scmp.eq.s32.totalorder %s16, 0
      %p57 = por %p55, %p56
      %p58 = scmp.ne.s32.totalorder %s50, %s52
      %p59 = scmp.eq.s32.totalorder %s21, 1
      %p60 = por %p58, %p59
      %p61 = scmp.ne.s32.totalorder %s52, %s53
      %p62 = scmp.eq.s32.totalorder %s21, 0
      %p63 = por %p61, %p62
      %p64 = scmp.ne.s32.totalorder %s52, %s53
      %p65 = scmp.eq.s32.totalorder %s22, 1
      %p66 = por %p64, %p65
      %p68 = scmp.ne.s32.totalorder %s53, %s67
      %p69 = scmp.eq.s32.totalorder %s22, 0
      %p70 = por %p68, %p69
      %s72 = sadd.s32 %s71, 1
      %p75 = scmp.eq.s32.totalorder %s16, 1
      %p76 = scmp.ne.s32.totalorder %s71, %s73
      %p77 = scmp.eq.s32.totalorder %s16, 0
      %p78 = por %p76, %p77
      %p79 = scmp.ne.s32.totalorder %s71, %s73
      %p80 = scmp.eq.s32.totalorder %s21, 1
      %p81 = por %p79, %p80
      %p82 = scmp.ne.s32.totalorder %s73, %s74
      %p83 = scmp.eq.s32.totalorder %s21, 0
      %p84 = por %p82, %p83
      %p85 = scmp.ne.s32.totalorder %s73, %s74
      %p86 = scmp.eq.s32.totalorder %s22, 1
      %p87 = por %p85, %p86
      %p89 = scmp.ne.s32.totalorder %s74, %s88
      %p90 = scmp.eq.s32.totalorder %s22, 0
      %p91 = por %p89, %p90
      %s92 = ssub.s32 %s16, %s23
      %p93 = scmp.eq.s32.totalorder %s92, 0
      %s95 = sadd.s32 %s94, 1
      %s96 = scalar_select %p93, %s94, %s95
      %p99 = pneg %p93
      %p100 = scmp.eq.s32.totalorder %s16, 1
      %p101 = por %p99, %p100
      %p102 = scmp.ne.s32.totalorder %s94, %s97
      %p103 = scmp.eq.s32.totalorder %s16, 0
      %p104 = por %p102, %p103
      %p105 = scmp.ne.s32.totalorder %s94, %s97
      %p106 = scmp.eq.s32.totalorder %s21, 1
      %p107 = por %p105, %p106
      %p108 = scmp.ne.s32.totalorder %s97, %s98
      %p109 = scmp.eq.s32.totalorder %s21, 0
      %p110 = por %p108, %p109
      %p111 = scmp.ne.s32.totalorder %s97, %s98
      %p112 = scmp.eq.s32.totalorder %s22, 1
      %p113 = por %p111, %p112
      %p115 = scmp.ne.s32.totalorder %s98, %s114
      %p116 = scmp.eq.s32.totalorder %s22, 0
      %p117 = por %p115, %p116
      %p118 = scmp.le.s32.totalorder 1, %s16
      %p119 = scmp.lt.s32.totalorder %s16, 3
      %p120 = pnand %p118, %p119
      %p121 = pneg %p120
      // Predicated region
      $region9: #{tpu_custom_call.1} parent=5 // pred_check
        _
      $region10: #{tpu_custom_call.1} parent=5 // pred_check_branch
        %123 = sbr.rel (%p120) target = $region12
      $region11: #{tpu_custom_call.1} parent=5 // pred_region
        %s124 = ssub.s32 %s16, 1
        // Predicated region
        $region13: #{tpu_custom_call.1} parent=11 // pred_check
          %p125 = pneg %p63
        $region14: #{tpu_custom_call.1} parent=11 // pred_check_branch
          %127 = sbr.rel (%p125) target = $region16
        $region15: #{tpu_custom_call.1} parent=11 // pred_region
          %s129 = ssub.s32 1024, 1024
          %130 = vsyncadd [#allocation6], %s129
          %s131 = sshll.u32 [#allocation5], 4
          %s132 = int_to_ptr.vmem [resolvable:$true] %s131
          %137 = dma.hbm_to_vmem [thread:$0]  %s1, 1024, %s132, [#allocation6], 256, 256, 16
        $region16: #{tpu_custom_call.1} parent=11 // pred_fallthru
          _
        // Predicated region
        $region17: #{tpu_custom_call.1} parent=11 // pred_check
          %p138 = pneg %p84
        $region18: #{tpu_custom_call.1} parent=11 // pred_check_branch
          %140 = sbr.rel (%p138) target = $region20
        $region19: #{tpu_custom_call.1} parent=11 // pred_region
          _
        $region20: #{tpu_custom_call.1} parent=11 // pred_fallthru
          _
      $region12: #{tpu_custom_call.1} parent=5 // pred_fallthru
        _
      %p141 = scmp.lt.s32.totalorder %s16, 2
      // Predicated region
      $region21: #{tpu_custom_call.1} parent=5 // pred_check
        %p142 = pneg %p141
      $region22: #{tpu_custom_call.1} parent=5 // pred_check_branch
        %144 = sbr.rel (%p142) target = $region24
      $region23: #{tpu_custom_call.1} parent=5 // pred_region
        // Predicated region
        $region25: #{tpu_custom_call.1} parent=23 // pred_check
          %p145 = pneg %p36
        $region26: #{tpu_custom_call.1} parent=23 // pred_check_branch
          %147 = sbr.rel (%p145) target = $region28
        $region27: #{tpu_custom_call.1} parent=23 // pred_region
          %s148 = sand.u32 %s26, 1
          %s149 = scalar_lea.sflag [#allocation3], %s148
          %s150 = sand.u32 %s26, 1
          %s151 = smul.addr %s150, 8
          %s152 = scalar_lea.vmem [#allocation2], %s151
          %s154 = ssub.s32 128, 128
          %155 = vsyncadd %s149, %s154
          %s156 = smul.addr %s16, 128
          %s157 = scalar_lea.hbm %s0, %s156
          %s159 = sshll.u32 %s152, 4
          %s160 = int_to_ptr.vmem [resolvable:$true] %s159
          %162 = dma.hbm_to_vmem [thread:$0]  %s157, 128, %s160, %s149
        $region28: #{tpu_custom_call.1} parent=23 // pred_fallthru
          _
      $region24: #{tpu_custom_call.1} parent=5 // pred_fallthru
        _
      %p163 = scmp.le.s32.totalorder 1, %s16
      %p164 = scmp.lt.s32.totalorder %s16, 3
      %p165 = pnand %p163, %p164
      %p166 = pneg %p165
      // Predicated region
      $region29: #{tpu_custom_call.1} parent=5 // pred_check
        _
      $region30: #{tpu_custom_call.1} parent=5 // pred_check_branch
        %168 = sbr.rel (%p165) target = $region32
      $region31: #{tpu_custom_call.1} parent=5 // pred_region
        %s169 = ssub.s32 %s16, 1
        %s170 = sand.u32 %s29, 1
        %s171 = scalar_lea.sflag [#allocation3], %s170
        %s172 = sand.u32 %s29, 1
        %s173 = smul.addr %s172, 8
        %s174 = scalar_lea.vmem [#allocation2], %s173
        // Predicated region
        $region33: #{tpu_custom_call.1} parent=31 // pred_check
          %p175 = pneg %p42
        $region34: #{tpu_custom_call.1} parent=31 // pred_check_branch
          %177 = sbr.rel (%p175) target = $region36
        $region35: #{tpu_custom_call.1} parent=31 // pred_region
          %178 = dma.done %s171, 128
        $region36: #{tpu_custom_call.1} parent=31 // pred_fallthru
          _
        // Predicated region
        $region37: #{tpu_custom_call.1} parent=31 // pred_check
          %p179 = pneg %p63
        $region38: #{tpu_custom_call.1} parent=31 // pred_check_branch
          %181 = sbr.rel (%p179) target = $region40
        $region39: #{tpu_custom_call.1} parent=31 // pred_region
          %182 = dma.done [#allocation6], 1024
        $region40: #{tpu_custom_call.1} parent=31 // pred_fallthru
          _
        %s183 = sand.u32 %s29, 1
        %s184 = scalar_lea.sflag [#allocation3], %s183
        %s185 = sand.u32 %s29, 1
        %s186 = smul.addr %s185, 8
        %s187 = scalar_lea.vmem [#allocation2], %s186
        %p188 = pneg %p42
        %p189 = pneg %p39
        %p190 = pneg %p63
        %p191 = pneg %p60
        %p192 = pneg %p84
        %p193 = pneg %p81
        %p194 = pneg %p110
        %p195 = pneg %p107
        %s196 = sand.u32 %s97, 1
        %s197 = scalar_lea.sflag [#allocation4], %s196
        %s198 = sand.u32 %s97, 1
        %s199 = smul.addr %s198, 8
        %s200 = scalar_lea.vmem [#allocation7], %s199
        %v201 = vld [vmem:[%s174] sm:$0xff]
        %v202 = vld [vmem:[#allocation5] sm:$0xff]
        %v203 = vld [vmem:[#allocation5 + $0x8] sm:$0xff]
        %v204 = vld [vmem:[#allocation5 + $0x10] sm:$0xff]
        %v205 = vld [vmem:[#allocation5 + $0x18] sm:$0xff]
        %v206 = vld [vmem:[#allocation5 + $0x20] sm:$0xff]
        %v207 = vld [vmem:[#allocation5 + $0x28] sm:$0xff]
        %v208 = vld [vmem:[#allocation5 + $0x30] sm:$0xff]
        %v209 = vld [vmem:[#allocation5 + $0x38] sm:$0xff]
        %v210 = vld [vmem:[%s2] sm:$0x3]
        %v212 = vlaneseq
        %v213 = vshrl.u32 %v212, 7
        %v214 = vsub.s32 0, %v213
        %v215 = vrot.slane %v210, %v214
        %v216 = vlaneseq
        %v217 = vshrl.u32 %v216, 7
        %v218 = vsub.s32 1, %v217
        %v219 = vrot.slane %v210, %v218
        %vm222 = vcmask 261120
        %v224 = vsel %vm222, %v201, 0
        %226 = vmatprep.subr.mxu0 0.0
        %227 = vmatpush1.msra.mxu0 0.0
        %228 = vmatprep.subr.mxu0 0.0
        %229 = vmatpush1.msra.mxu0 0.0
        %230 = vmatprep.subr.mxu0 0.0
        %231 = vmatpush1.msra.mxu0 0.0
        %232 = vmatprep.subr.mxu0 0.0
        %233 = vmatpush1.msra.mxu0 0.0
        %234 = vmatprep.subr.mxu0 0.0
        %235 = vmatpush1.msra.mxu0 0.0
        %236 = vmatprep.subr.mxu0 0.0
        %237 = vmatpush1.msra.mxu0 0.0
        %238 = vmatprep.subr.mxu0 0.0
        %239 = vmatpush1.msra.mxu0 0.0
        %240 = vmatprep.subr.mxu0 0.0
        %241 = vmatpush1.msra.mxu0 0.0
        %242 = vmatprep.subr.mxu0 0.0
        %243 = vmatpush1.msra.mxu0 0.0
        %244 = vmatprep.subr.mxu0 0.0
        %245 = vmatpush1.msra.mxu0 0.0
        %246 = vmatprep.subr.mxu0 0.0
        %247 = vmatpush1.msra.mxu0 0.0
        %248 = vmatprep.subr.mxu0 0.0
        %249 = vmatpush1.msra.mxu0 0.0
        %250 = vmatprep.subr.mxu0 %v209
        %251 = vmatpush1.msra.mxu0 %v208
        %252 = vmatprep.subr.mxu0 %v207
        %253 = vmatpush1.msra.mxu0 %v206
        %254 = vmatprep.subr.mxu0 %v205
        %255 = vmatpush1.msra.mxu0 %v204
        %256 = vmatprep.subr.mxu0 %v203
        %257 = vmatpush1.msra.mxu0 %v202
        %258 = vmatprep.subr.mxu0 0.0
        %259 = vmatpush2.msra.mxu0 0.0
        %260 = vmatprep.subr.mxu0 0.0
        %261 = vmatpush2.msra.mxu0 0.0
        %262 = vmatprep.subr.mxu0 0.0
        %263 = vmatpush2.msra.mxu0 0.0
        %264 = vmatprep.subr.mxu0 0.0
        %265 = vmatpush2.msra.mxu0 0.0
        %266 = vmatprep.subr.mxu0 0.0
        %267 = vmatpush2.msra.mxu0 0.0
        %268 = vmatprep.subr.mxu0 0.0
        %269 = vmatpush2.msra.mxu0 0.0
        %270 = vmatprep.subr.mxu0 0.0
        %271 = vmatpush2.msra.mxu0 0.0
        %272 = vmatprep.subr.mxu0 0.0
        %273 = vmatpush2.msra.mxu0 0.0
        %274 = vmatprep.subr.mxu0 0.0
        %275 = vmatpush2.msra.mxu0 0.0
        %276 = vmatprep.subr.mxu0 0.0
        %277 = vmatpush2.msra.mxu0 0.0
        %278 = vmatprep.subr.mxu0 0.0
        %279 = vmatpush2.msra.mxu0 0.0
        %280 = vmatprep.subr.mxu0 0.0
        %281 = vmatpush2.msra.mxu0 0.0
        %282 = vmatprep.subr.mxu0 0.0
        %283 = vmatpush2.msra.mxu0 0.0
        %284 = vmatprep.subr.mxu0 0.0
        %285 = vmatpush2.msra.mxu0 0.0
        %286 = vmatprep.subr.mxu0 0.0
        %287 = vmatpush2.msra.mxu0 0.0
        %288 = vmatprep.subr.mxu0 0.0
        %289 = vmatpush2.msra.mxu0 0.0
        %290 = vmatprep.mubr.f32.mxu0 0.0
        %291 = vmatmul.mubr.f32.gmra.mxu0 %v224
        %v292 = vpop.f32.mrf.mxu0
        %v293 = vadd.f32 %v215, %v292
        %v294 = vpop.f32.mrf.mxu0
        %v295 = vadd.f32 %v219, %v294
        %296 = vdwg.mxu0
        %v297 = vmax.f32 %v295, -20.0
        %v298 = vmin.f32 %v297, 20.0
        %v299 = vlaneseq
        %v300 = vand.u32 %v299, 127
        %vm301 = vcmp.eq.s32.totalorder %v300, 64
        %v302 = vsel %vm301, %v293, 0.0
        %303 = vadd.xlane.f32.xlu0 %v302
        %v304 = vpop.xlane.xlu0 %303
        %v305 = vxor.u32 %v304, 2147483648
        %v306 = vmul.f32 %v305, 1.442695
        %v307 = vpow.pop %v306
        %v308 = vadd.f32 %v307, 1.0
        %v309 = vrcp.pop %v308
        %v310 = vmul.f32 1.0, %v309
        %v311 = vsub.f32 0.0, %v298
        %v312 = vmul.f32 %v311, 1.442695
        %v313 = vpow.pop %v312
        %v314 = vmul.f32 %v293, %v313
        %v315 = vmul.f32 %v314, 0.5
        %v316 = vmul.f32 %v315, %v314
        %v317 = vsub.f32 %v298, %v316
        %v318 = vmul.f32 %v317, 1.442695
        %v319 = vpow.pop %v318
        %v320 = vmul.f32 %v319, 0.7978846
        %v321 = vmul.f32 %v314, 0.70710677
        %v322 = verf.f32.pop %v321
        %v323 = vmul.f32 %v293, %v322
        %v324 = vadd.f32 %v320, %v323
        %v325 = vmul.f32 %v310, %v324
        %326 = vst [vmem:[%s200] sm:$0xff] %v325
        %s327 = sand.u32 %s97, 1
        %s328 = scalar_lea.sflag [#allocation4], %s327
        %s329 = sand.u32 %s97, 1
        %s330 = smul.addr %s329, 8
        %s331 = scalar_lea.vmem [#allocation7], %s330
        // Predicated region
        $region41: #{tpu_custom_call.1} parent=31 // pred_check
          %p332 = pneg %p107
        $region42: #{tpu_custom_call.1} parent=31 // pred_check_branch
          %334 = sbr.rel (%p332) target = $region44
        $region43: #{tpu_custom_call.1} parent=31 // pred_region
          %s336 = ssub.s32 128, 128
          %337 = vsyncadd %s328, %s336
          %s338 = smul.addr %s21, 128
          %s339 = scalar_lea.hbm %s3, %s338
          %s341 = sshll.u32 %s331, 4
          %s342 = int_to_ptr.vmem [resolvable:$true] %s341
          %344 = dma.vmem_to_hbm [thread:$0]  %s342, 128, %s339, %s328
        $region44: #{tpu_custom_call.1} parent=31 // pred_fallthru
          _
      $region32: #{tpu_custom_call.1} parent=5 // pred_fallthru
        _
      %p345 = scmp.le.s32.totalorder 2, %s16
      // Predicated region
      $region45: #{tpu_custom_call.1} parent=5 // pred_check
        %p346 = pneg %p345
      $region46: #{tpu_custom_call.1} parent=5 // pred_check_branch
        %348 = sbr.rel (%p346) target = $region48
      $region47: #{tpu_custom_call.1} parent=5 // pred_region
        %s349 = ssub.s32 %s16, 2
        // Predicated region
        $region49: #{tpu_custom_call.1} parent=47 // pred_check
          %p350 = pneg %p113
        $region50: #{tpu_custom_call.1} parent=47 // pred_check_branch
          %352 = sbr.rel (%p350) target = $region52
        $region51: #{tpu_custom_call.1} parent=47 // pred_region
          %s353 = sand.u32 %s98, 1
          %s354 = scalar_lea.sflag [#allocation4], %s353
          %s355 = sand.u32 %s98, 1
          %s356 = smul.addr %s355, 8
          %s357 = scalar_lea.vmem [#allocation7], %s356
          %358 = dma.done %s354, 128
        $region52: #{tpu_custom_call.1} parent=47 // pred_fallthru
          _
      $region48: #{tpu_custom_call.1} parent=5 // pred_fallthru
        _
    $region6: #{tpu_custom_call.1} parent=1 // loop_footer
      %s20 = sadd.s32 1, %s16
    $region7: #{tpu_custom_call.1} parent=1 // loop_footer_branch
      %15 = sbr.rel target = $region3
    $region8: #{tpu_custom_call.1} parent=1 // loop_exit
      _
    %359 = vsyncpa [#allocation3], 1
    %s360 = scalar_lea.sflag [#allocation3], 1
    %361 = vsyncpa %s360, 1
    %362 = vsyncpa [#allocation6], 1
    %363 = vsyncpa [#allocation4], 1
    %s364 = scalar_lea.sflag [#allocation4], 1
    %365 = vsyncpa %s364, 1

</llo_original>
